<compile_context>
chip_gen: v7x
topology: tpu7x:2x2x1
jax: 0.10.0
libtpu: 0.0.40
codegen_flags: <defaults>
</compile_context>

<pallas_src>
import functools
import math

import jax
import jax.numpy as jnp
from jax.experimental import pallas as pl
from jax.experimental.pallas import tpu as pltpu


def _lcm(a, b):
    return a * b // math.gcd(a, b)


def _cdiv(a, b):
    return -(-a // b)


def _round_up(a, m):
    return _cdiv(a, m) * m


def _learnable_sigmoid_kernel(slope_ref, x_ref, o_ref, *, beta):
    # slope_ref: (1, L) resident in VMEM; x_ref / o_ref: (tile_rows, L).
    z = x_ref[...].astype(jnp.float32) * slope_ref[...].astype(jnp.float32)
    # beta * sigmoid(z) == 0.5*beta*tanh(0.5*z) + 0.5*beta  -> one EUP push.
    hb = 0.5 * beta
    o_ref[...] = (hb * jnp.tanh(0.5 * z) + hb).astype(o_ref.dtype)


def _jnp_reference(x, slope, beta):
    z = x.astype(jnp.float32) * slope.astype(jnp.float32)
    return (beta * jax.nn.sigmoid(z)).astype(x.dtype)


def learnable_sigmoid(x, slope, beta=1.0, *,
                      target_block_bytes=4 << 20,
                      small_bypass_bytes=256 << 10):
    """x: (..., F) array, slope: (F,) parameter. Returns beta*sigmoid(slope*x)."""
    orig_shape = x.shape
    F = orig_shape[-1]
    assert slope.shape == (F,)
    total = x.size
    itemsize = x.dtype.itemsize
    # NOTE: beta is baked in as a static Python constant (matches the module,
    # where beta is an int hyperparameter). If beta ever becomes a traced value,
    # pass it through SMEM instead.
    beta = float(beta)

    # ---- tiny activations: pallas_call overhead dominates, let XLA fuse ----
    if total * itemsize < small_bypass_bytes:
        return _jnp_reference(x, slope, beta)

    # ---- lane-dense layout (rows, L): F | L and 128 | L ----
    L = _lcm(F, 128)
    while L < 512 and total % (2 * L) == 0:
        L *= 2
    R = total // L
    main = R * L
    if R == 0:
        # Tensor smaller than a single lane-dense row (huge F): no good tiling.
        return _jnp_reference(x, slope, beta)

    x_flat = x.reshape(-1)
    x2 = x_flat[:main].reshape(R, L)
    # feature index of x2[r, c] is c % F  (since F | L and L | r*L).
    slope2 = jnp.tile(slope, L // F).reshape(1, L).astype(jnp.float32)

    # ---- dtype-aware row tile, sized in bytes, with a minimum grid depth ----
    factor = max(8, 32 // itemsize)          # sublane pack: 8 f32 / 16 bf16 / 32 i8
    target_rows = max(factor,
                      (target_block_bytes // (L * itemsize)) // factor * factor)
    if R <= factor:
        tile_rows = R                        # full extent: always a legal block dim
    else:
        min_steps = 4 if main * itemsize >= (1 << 20) else 2
        tile_rows = min(target_rows, _round_up(_cdiv(R, min_steps), factor))
        if tile_rows >= R:
            tile_rows = R
    grid = (_cdiv(R, tile_rows),)

    # ---- size-aware VMEM limit: double-buffered in+out blocks + slop ----
    block_bytes = tile_rows * L * itemsize
    vmem_bytes = 2 * 2 * block_bytes + 2 * 4 * L + (4 << 20)
    vmem_bytes = int(min(max(vmem_bytes, 16 << 20), 32 << 20))

    cost = pl.CostEstimate(
        flops=4 * main,
        transcendentals=main,
        bytes_accessed=2 * main * itemsize + 4 * L,
    )

    kernel = functools.partial(_learnable_sigmoid_kernel, beta=beta)

    out_main = pl.pallas_call(
        kernel,
        out_shape=jax.ShapeDtypeStruct((R, L), x.dtype),
        grid_spec=pltpu.PrefetchScalarGridSpec(
            num_scalar_prefetch=0,
            grid=grid,
            in_specs=[
                pl.BlockSpec((1, L), lambda i: (0, 0)),          # slope (resident)
                pl.BlockSpec((tile_rows, L), lambda i: (i, 0)),  # x tile
            ],
            out_specs=pl.BlockSpec((tile_rows, L), lambda i: (i, 0)),
        ),
        compiler_params=pltpu.CompilerParams(
            dimension_semantics=("parallel",),
            vmem_limit_bytes=vmem_bytes,
        ),
        cost_estimate=cost,
    )(slope2, x2)

    if main == total:
        return out_main.reshape(orig_shape)

    # ---- ragged tail (< L elems, starts on a feature boundary): plain jnp ----
    tail = x_flat[main:].reshape(-1, F)
    out_tail = _jnp_reference(tail, slope, beta)
    return jnp.concatenate(
        [out_main.reshape(-1), out_tail.reshape(-1)]).reshape(orig_shape)


if __name__ == "__main__":
    key = jax.random.PRNGKey(0)
    kx1, kx2, kx3, ks = jax.random.split(key, 4)

    # Module: LearnableSigmoid(in_features=32, beta=1)
    in_features = 32
    beta = 1.0
    # nn.Parameter(torch.ones(in_features)), perturbed so broadcast is exercised.
    slope = jnp.ones((in_features,), jnp.float32) + 0.01 * jax.random.normal(
        ks, (in_features,), jnp.float32)

    def ref(x):
        return beta * jax.nn.sigmoid(slope * x)

    # 1) Small discriminator-style activation (batch=2, seq=8, F=32): force the
    #    Pallas path so the kernel itself is exercised even below the bypass.
    x_small = jax.random.normal(kx1, (2, 8, in_features), jnp.float32)
    y_small = jax.block_until_ready(
        learnable_sigmoid(x_small, slope, beta=beta, small_bypass_bytes=0))
    assert y_small.shape == x_small.shape
    assert jnp.allclose(y_small, ref(x_small), atol=1e-5, rtol=1e-5)

    # 2) Larger activation (512 KiB): default path, lane-dense multi-step grid.
    x_big = jax.random.normal(kx2, (2, 2048, in_features), jnp.float32)
    y_big = jax.block_until_ready(learnable_sigmoid(x_big, slope, beta=beta))
    assert jnp.allclose(y_big, ref(x_big), atol=1e-5, rtol=1e-5)

    # 3) Ragged case (total not a multiple of lcm(F,128)): main slab + jnp tail.
    x_odd = jax.random.normal(kx3, (3, 7, in_features), jnp.float32)
    y_odd = jax.block_until_ready(
        learnable_sigmoid(x_odd, slope, beta=beta, small_bypass_bytes=0))
    assert jnp.allclose(y_odd, ref(x_odd), atol=1e-5, rtol=1e-5)

    print("KERNEL_OK")
</pallas_src>

<mosaic_0001>
module attributes {stable_mosaic.version = 11 : i64} {
  func.func @_learnable_sigmoid_kernel(%arg0: i32, %arg1: memref<1x512xf32, #tpu.memory_space<vmem>>, %arg2: memref<1x512xf32, #tpu.memory_space<vmem>>, %arg3: memref<1x512xf32, #tpu.memory_space<vmem>>) attributes {dimension_semantics = [#tpu.dimension_semantics<parallel>], iteration_bounds = array<i64: 1>, scalar_prefetch = 0 : i64, scratch_operands = 0 : i64, tpu.core_type = #tpu.core_type<tc>, window_params = [{pipeline_mode = #tpu.pipeline_mode<synchronous>, transform_indices = @transform_0, window_bounds = array<i64: 1, 512>}, {transform_indices = @transform_1, window_bounds = array<i64: 1, 512>}, {transform_indices = @transform_2, window_bounds = array<i64: 1, 512>}]} {
    %c0 = arith.constant 0 : index
    %c0_0 = arith.constant 0 : index
    %0 = vector.load %arg2[%c0, %c0_0] : memref<1x512xf32, #tpu.memory_space<vmem>>, vector<1x512xf32>
    %c0_1 = arith.constant 0 : index
    %c0_2 = arith.constant 0 : index
    %1 = vector.load %arg1[%c0_1, %c0_2] : memref<1x512xf32, #tpu.memory_space<vmem>>, vector<1x512xf32>
    %2 = arith.mulf %0, %1 : vector<1x512xf32>
    %cst = arith.constant 5.000000e-01 : f32
    %3 = vector.broadcast %cst : f32 to vector<1x512xf32>
    %4 = arith.mulf %3, %2 : vector<1x512xf32>
    %5 = math.tanh %4 : vector<1x512xf32>
    %cst_3 = arith.constant 5.000000e-01 : f32
    %6 = vector.broadcast %cst_3 : f32 to vector<1x512xf32>
    %7 = arith.mulf %6, %5 : vector<1x512xf32>
    %cst_4 = arith.constant 5.000000e-01 : f32
    %8 = vector.broadcast %cst_4 : f32 to vector<1x512xf32>
    %9 = arith.addf %7, %8 : vector<1x512xf32>
    %c0_5 = arith.constant 0 : index
    %c0_6 = arith.constant 0 : index
    %10 = vector.load %arg3[%c0_5, %c0_6] : memref<1x512xf32, #tpu.memory_space<vmem>>, vector<1x512xf32>
    tpu.vector_store %arg3[%c0_5, %c0_6], %9 {strides = array<i32>} : memref<1x512xf32, #tpu.memory_space<vmem>>, vector<1x512xf32>,
    return
  }
  func.func @transform_0(%arg0: i32) -> (i32, i32) {
    %c0_i32 = arith.constant 0 : i32
    %c0_i32_0 = arith.constant 0 : i32
    %c0_i32_1 = arith.constant 0 : i32
    return %c0_i32, %c0_i32_0 : i32, i32
  }
  func.func @transform_1(%arg0: i32) -> (i32, i32) {
    %c0_i32 = arith.constant 0 : i32
    %c0_i32_0 = arith.constant 0 : i32
    return %arg0, %c0_i32 : i32, i32
  }
  func.func @transform_2(%arg0: i32) -> (i32, i32) {
    %c0_i32 = arith.constant 0 : i32
    %c0_i32_0 = arith.constant 0 : i32
    return %arg0, %c0_i32 : i32, i32
  }
}

</mosaic_0001>

<llo_original>
// kernel: tpu_custom_call.1
$region0: #{tpu_custom_call.1}
  #allocation0 [shape = 'u32[]', space=smem, size = 0x4, offset = 0x4, fixed_abs, tag = 'smem constant byte address 0x4 - core index']
  #allocation1 [shape = 'u32[144,128]{1,0:T(1,128)}', space=vmem, size = 0x12000, scoped, tag = 'internal scratch']
  %s0 = inlined_call_operand.hbm [shape: f32[1,512], index: 0, kind: input, shape index: {}]
  %s1 = inlined_call_operand.hbm [shape: f32[1,512], index: 1, kind: input, shape index: {}]
  %s2 = inlined_call_operand.hbm [shape: f32[1,512], index: 2, kind: output, shape index: {}]
  %s3 = sld [smem:[#allocation0]]
  $region26: #{tpu_custom_call.1} parent=0
    _
  %s5 = ssub.s32 1, %s3
  %s6 = scalar_select 0, %s5, %s3
  $region1: #{tpu_custom_call.1} parent=0
    #allocation2 [shape = 'u8[2048]{0}', space=vmem, size = 0x800, scoped, tag = 'input window, operand 0, single buffered']
    #allocation3 [shape = 's32[1]{0}', space=sflag, size = 0x4, scoped, tag = 'scoped memory for tpu_custom_call.1']
    #allocation4 [shape = 's32[1]{0}', space=sflag, size = 0x4, scoped, tag = 'scoped memory for tpu_custom_call.1']
    #allocation5 [shape = 'u8[2048]{0}', space=vmem, size = 0x800, scoped, tag = 'input window, operand 1, single buffered']
    #allocation6 [shape = 's32[1]{0}', space=sflag, size = 0x4, scoped, tag = 'scoped memory for tpu_custom_call.1']
    #allocation7 [shape = 'u8[2048]{0}', space=vmem, size = 0x800, scoped, tag = 'output window, operand 0, single buffered']
    %7 = vsyncpa [#allocation3], 0
    %8 = vsyncpa [#allocation6], 0
    %9 = vsyncpa [#allocation4], 0
    // Predicated region
    $region2: #{tpu_custom_call.1} parent=1 // pred_check
      _
    $region3: #{tpu_custom_call.1} parent=1 // pred_check_branch
      %11 = sbr.rel (0) target = $region5
    $region4: #{tpu_custom_call.1} parent=1 // pred_region
      %s13 = ssub.s32 64, 64
      %14 = vsyncadd [#allocation3], %s13
      %s16 = sshll.u32 [#allocation2], 4
      %s17 = int_to_ptr.vmem [resolvable:$true] %s16
      %19 = dma.hbm_to_vmem [thread:$0]  %s0, 64, %s17, [#allocation3]
    $region5: #{tpu_custom_call.1} parent=1 // pred_fallthru
      _
    // Predicated region
    $region6: #{tpu_custom_call.1} parent=1 // pred_check
      _
    $region7: #{tpu_custom_call.1} parent=1 // pred_check_branch
      %21 = sbr.rel (0) target = $region9
    $region8: #{tpu_custom_call.1} parent=1 // pred_region
      %s23 = ssub.s32 64, 64
      %24 = vsyncadd [#allocation6], %s23
      %s26 = sshll.u32 [#allocation5], 4
      %s27 = int_to_ptr.vmem [resolvable:$true] %s26
      %29 = dma.hbm_to_vmem [thread:$0]  %s1, 64, %s27, [#allocation6]
    $region9: #{tpu_custom_call.1} parent=1 // pred_fallthru
      _
    // Predicated region
    $region10: #{tpu_custom_call.1} parent=1 // pred_check
      _
    $region11: #{tpu_custom_call.1} parent=1 // pred_check_branch
      %31 = sbr.rel (0) target = $region13
    $region12: #{tpu_custom_call.1} parent=1 // pred_region
      %32 = dma.done [#allocation3], 64
    $region13: #{tpu_custom_call.1} parent=1 // pred_fallthru
      _
    // Predicated region
    $region14: #{tpu_custom_call.1} parent=1 // pred_check
      _
    $region15: #{tpu_custom_call.1} parent=1 // pred_check_branch
      %34 = sbr.rel (0) target = $region17
    $region16: #{tpu_custom_call.1} parent=1 // pred_region
      %35 = dma.done [#allocation6], 64
    $region17: #{tpu_custom_call.1} parent=1 // pred_fallthru
      _
    %v36 = vld [vmem:[#allocation5] sm:$0xf]
    %v37 = vld [vmem:[#allocation2] sm:$0xf]
    %v38 = vmul.f32 %v36, %v37
    %v39 = vmul.f32 %v38, 0.5
    %v40 = vtanh.pop %v39
    %v41 = vmul.f32 %v40, 0.5
    %v42 = vadd.f32 %v41, 0.5
    %v43 = vlaneseq
    %vm44 = vcmp.ge.s32.totalorder %v43, 0
    %vm45 = vcmp.lt.s32.totalorder %v43, 512
    %vm46 = vmand %vm44, %vm45
    %47 = vst.msk [vmem:[#allocation7] sm:$0xf] %vm46, %v42
    // Predicated region
    $region18: #{tpu_custom_call.1} parent=1 // pred_check
      _
    $region19: #{tpu_custom_call.1} parent=1 // pred_check_branch
      %49 = sbr.rel (0) target = $region21
    $region20: #{tpu_custom_call.1} parent=1 // pred_region
      %s51 = ssub.s32 64, 64
      %52 = vsyncadd [#allocation4], %s51
      %s54 = sshll.u32 [#allocation7], 4
      %s55 = int_to_ptr.vmem [resolvable:$true] %s54
      %57 = dma.vmem_to_hbm [thread:$0]  %s55, 64, %s2, [#allocation4]
    $region21: #{tpu_custom_call.1} parent=1 // pred_fallthru
      _
    // Predicated region
    $region22: #{tpu_custom_call.1} parent=1 // pred_check
      _
    $region23: #{tpu_custom_call.1} parent=1 // pred_check_branch
      %59 = sbr.rel (0) target = $region25
    $region24: #{tpu_custom_call.1} parent=1 // pred_region
      %60 = dma.done [#allocation4], 64
    $region25: #{tpu_custom_call.1} parent=1 // pred_fallthru
      _
    %61 = vsyncpa [#allocation3], 1
    %62 = vsyncpa [#allocation6], 1
    %63 = vsyncpa [#allocation4], 1

</llo_original>
